<compile_context>
chip_gen: v7x
topology: tpu7x:2x2x1
jax: 0.10.0
libtpu: 0.0.40
codegen_flags: <defaults>
</compile_context>

<pallas_src>
import jax
import jax.numpy as jnp
from jax.experimental import pallas as pl
from jax.experimental.pallas import tpu as pltpu


def _round_up(x: int, m: int) -> int:
    return ((x + m - 1) // m) * m


def _pi_embedding_kernel(idx_ref, param_ref, out_ref):
    """Single fused step covering ALL parameters.

    idx_ref   : VMEM int32 (1, N_pad)       requested columns (-1 == padding)
    param_ref : VMEM f32   (PB_pad, S_pad)  all params stacked on sublanes
    out_ref   : VMEM f32   (PB_pad, N_pad)  sigmoid(2 * clamp(gathered))
    """
    s_pad = param_ref.shape[1]
    n_pad = out_ref.shape[1]

    # One-hot gather matrix from a single broadcast compare (VPU), exact 0/1.
    lane = jax.lax.broadcasted_iota(jnp.int32, (s_pad, n_pad), 0)   # (S, N)
    onehot = jnp.where(lane == idx_ref[...], 1.0, 0.0)              # (S, N) f32

    # Gather the N requested columns of the RAW params on the MXU:
    # (PB, S) @ (S, N) -> (PB, N).  Exact (one-hot 0/1, full-f32 precision).
    gathered = jax.lax.dot_general(
        param_ref[...], onehot,
        dimension_numbers=(((1,), (0,)), ((), ())),
        preferred_element_type=jnp.float32,
        precision=jax.lax.Precision.HIGHEST)

    # clamp + sigmoid(2x) only on the gathered slab; sigmoid(2x)=0.5*(tanh(x)+1).
    g = jnp.clip(gathered, -3.5, 3.5)
    out_ref[...] = 0.5 * (jnp.tanh(g) + 1.0)


@jax.jit
def _pi_embedding_call(slab, idx_padded):
    """slab: (PB_pad, S_pad) f32, idx_padded: (1, N_pad) i32 -> (PB_pad, N_pad) f32."""
    pb_pad, s_pad = slab.shape
    n_pad = idx_padded.shape[1]
    return pl.pallas_call(
        _pi_embedding_kernel,
        out_shape=jax.ShapeDtypeStruct((pb_pad, n_pad), jnp.float32),
        grid=(1,),                                   # single fused step
        in_specs=[
            pl.BlockSpec((1, n_pad), lambda i: (0, 0)),        # idx (VMEM)
            pl.BlockSpec((pb_pad, s_pad), lambda i: (0, 0)),   # param slab
        ],
        out_specs=pl.BlockSpec((pb_pad, n_pad), lambda i: (0, 0)),
        compiler_params=pltpu.CompilerParams(
            dimension_semantics=("arbitrary",),      # one step: no TC split
            vmem_limit_bytes=32 * 1024 * 1024,       # explicit (v7x-safe) budget
        ),
    )(idx_padded, slab)


class PIEmbeddingPallas:
    """JAX/Pallas port of PIEmbedding (forward only, functional)."""

    def __init__(self, input_names, input_shape, batch_size=1, key=None):
        assert len(input_names) == len(input_shape)
        if key is None:
            key = jax.random.PRNGKey(0)
        self.input_names = list(input_names)
        self.input_shape = list(input_shape)
        self.batch_size = batch_size
        keys = jax.random.split(key, len(input_names))
        # torch.randn(batch_size, size) equivalent, deterministic.
        self.parameters_list = [
            jax.random.normal(k, (batch_size, size), dtype=jnp.float32)
            for k, size in zip(keys, input_shape)
        ]
        # Staging hoisted out of forward(): pad + stack all params once.
        self._stage_parameters()

    def _stage_parameters(self):
        b = self.batch_size
        p = len(self.parameters_list)
        s_max = max(self.input_shape)
        s_pad = _round_up(s_max, 128)          # lane-dense features
        pb_pad = _round_up(p * b, 8)           # sublane-dense (param, batch)
        slab = jnp.zeros((pb_pad, s_pad), jnp.float32)
        for i, param in enumerate(self.parameters_list):
            slab = slab.at[i * b:(i + 1) * b, :param.shape[1]].set(param)
        self._slab = slab

    def forward(self, idx):
        """idx: 1-D int array of indices; returns list of (B, N, 1) arrays."""
        idx = jnp.asarray(idx, dtype=jnp.int32).reshape(-1)
        n = int(idx.shape[0])
        min_size = min(self.input_shape)
        # Precondition (PyTorch would raise on OOB indices; the one-hot gather
        # would otherwise silently return sigmoid(0) = 0.5).
        if bool(jnp.any((idx < 0) | (idx >= min_size))):
            raise IndexError("idx out of range for PIEmbedding parameters")

        n_pad = _round_up(n, 128)
        idx_padded = jnp.full((1, n_pad), -1, jnp.int32).at[0, :n].set(idx)

        out = _pi_embedding_call(self._slab, idx_padded)   # (PB_pad, N_pad)

        b = self.batch_size
        return [out[i * b:(i + 1) * b, :n][:, :, None]
                for i in range(len(self.parameters_list))]


def _reference_forward(params_list, idx):
    outs = []
    for p in params_list:
        vals = jnp.clip(p[:, idx], -3.5, 3.5)
        outs.append(jax.nn.sigmoid(2.0 * vals)[:, :, None])
    return outs


if __name__ == "__main__":
    key = jax.random.PRNGKey(0)

    input_names = ["pi_a", "pi_b", "pi_c"]
    input_shape = [32, 32, 32]
    batch_size = 2

    module = PIEmbeddingPallas(input_names, input_shape,
                               batch_size=batch_size, key=key)

    idx = jnp.array([0, 3, 7, 12, 21, 30, 5, 9], dtype=jnp.int32)   # N = 8

    outputs = module.forward(idx)
    outputs = [jax.block_until_ready(o) for o in outputs]

    # Correctness check against a pure-JAX reference.
    refs = _reference_forward(module.parameters_list, idx)
    for o, r in zip(outputs, refs):
        assert o.shape == (batch_size, idx.shape[0], 1), o.shape
        assert jnp.allclose(o, r, atol=1e-5, rtol=1e-5), \
            float(jnp.max(jnp.abs(o - r)))

    print("KERNEL_OK")
</pallas_src>

<mosaic_0001>
module attributes {stable_mosaic.version = 11 : i64} {
  func.func @_pi_embedding_kernel(%arg0: i32, %arg1: memref<1x128xi32, #tpu.memory_space<vmem>>, %arg2: memref<8x128xf32, #tpu.memory_space<vmem>>, %arg3: memref<8x128xf32, #tpu.memory_space<vmem>>) attributes {dimension_semantics = [#tpu.dimension_semantics<arbitrary>], iteration_bounds = array<i64: 1>, scalar_prefetch = 0 : i64, scratch_operands = 0 : i64, tpu.core_type = #tpu.core_type<tc>, window_params = [{pipeline_mode = #tpu.pipeline_mode<synchronous>, transform_indices = @transform_0, window_bounds = array<i64: 1, 128>}, {pipeline_mode = #tpu.pipeline_mode<synchronous>, transform_indices = @transform_1, window_bounds = array<i64: 8, 128>}, {pipeline_mode = #tpu.pipeline_mode<synchronous>, transform_indices = @transform_2, window_bounds = array<i64: 8, 128>}]} {
    %0 = tpu.iota {dimensions = array<i32: 0>} : vector<128x128xi32>
    %c0 = arith.constant 0 : index
    %c0_0 = arith.constant 0 : index
    %1 = vector.load %arg1[%c0, %c0_0] : memref<1x128xi32, #tpu.memory_space<vmem>>, vector<1x128xi32>
    %2 = vector.broadcast %1 : vector<1x128xi32> to vector<128x128xi32>
    %3 = arith.cmpi eq, %0, %2 : vector<128x128xi32>
    %cst = arith.constant 1.000000e+00 : f32
    %cst_1 = arith.constant 0.000000e+00 : f32
    %4 = vector.broadcast %cst : f32 to vector<128x128xf32>
    %5 = vector.broadcast %cst_1 : f32 to vector<128x128xf32>
    %6 = arith.select %3, %4, %5 : vector<128x128xi1>, vector<128x128xf32>
    %c0_2 = arith.constant 0 : index
    %c0_3 = arith.constant 0 : index
    %7 = vector.load %arg2[%c0_2, %c0_3] : memref<8x128xf32, #tpu.memory_space<vmem>>, vector<8x128xf32>
    %cst_4 = arith.constant dense<0.000000e+00> : vector<8x128xf32>
    %8 = tpu.matmul %7, %6, %cst_4 {dimension_numbers = #tpu.dot_dimension_numbers<[1], [0], [0], [1], [0, 0, 1, 1], [], []>, precision = #tpu.contract_precision<fp32>} : vector<8x128xf32>, vector<128x128xf32>, vector<8x128xf32> -> vector<8x128xf32>
    %cst_5 = arith.constant -3.500000e+00 : f32
    %cst_6 = arith.constant 3.500000e+00 : f32
    %9 = vector.broadcast %cst_5 : f32 to vector<8x128xf32>
    %10 = arith.maximumf %9, %8 : vector<8x128xf32>
    %11 = vector.broadcast %cst_6 : f32 to vector<8x128xf32>
    %12 = arith.minimumf %11, %10 : vector<8x128xf32>
    %13 = math.tanh %12 : vector<8x128xf32>
    %cst_7 = arith.constant 1.000000e+00 : f32
    %14 = vector.broadcast %cst_7 : f32 to vector<8x128xf32>
    %15 = arith.addf %13, %14 : vector<8x128xf32>
    %cst_8 = arith.constant 5.000000e-01 : f32
    %16 = vector.broadcast %cst_8 : f32 to vector<8x128xf32>
    %17 = arith.mulf %16, %15 : vector<8x128xf32>
    %c0_9 = arith.constant 0 : index
    %c0_10 = arith.constant 0 : index
    %18 = vector.load %arg3[%c0_9, %c0_10] : memref<8x128xf32, #tpu.memory_space<vmem>>, vector<8x128xf32>
    tpu.vector_store %arg3[%c0_9, %c0_10], %17 {strides = array<i32>} : memref<8x128xf32, #tpu.memory_space<vmem>>, vector<8x128xf32>,
    return
  }
  func.func @transform_0(%arg0: i32) -> (i32, i32) {
    %c0_i32 = arith.constant 0 : i32
    %c0_i32_0 = arith.constant 0 : i32
    %c0_i32_1 = arith.constant 0 : i32
    return %c0_i32, %c0_i32_0 : i32, i32
  }
  func.func @transform_1(%arg0: i32) -> (i32, i32) {
    %c0_i32 = arith.constant 0 : i32
    %c0_i32_0 = arith.constant 0 : i32
    %c0_i32_1 = arith.constant 0 : i32
    return %c0_i32, %c0_i32_0 : i32, i32
  }
  func.func @transform_2(%arg0: i32) -> (i32, i32) {
    %c0_i32 = arith.constant 0 : i32
    %c0_i32_0 = arith.constant 0 : i32
    %c0_i32_1 = arith.constant 0 : i32
    return %c0_i32, %c0_i32_0 : i32, i32
  }
}

</mosaic_0001>

<llo_original>
// kernel: _pi_embedding_call.1
$region0: #{_pi_embedding_call.1}
  #allocation0 [shape = 'u32[]', space=smem, size = 0x4, offset = 0x4, fixed_abs, tag = 'smem constant byte address 0x4 - core index']
  #allocation1 [shape = 'u32[144,128]{1,0:T(1,128)}', space=vmem, size = 0x12000, scoped, tag = 'internal scratch']
  %s0 = inlined_call_operand.vmem [shape: s32[1,128], index: 0, kind: input, shape index: {}]
  %s1 = inlined_call_operand.hbm [shape: f32[8,128], index: 1, kind: input, shape index: {}]
  %s2 = inlined_call_operand.hbm [shape: f32[8,128], index: 2, kind: output, shape index: {}]
  %s3 = sld [smem:[#allocation0]]
  $region22: #{_pi_embedding_call.1} parent=0
    _
  %s5 = ssub.s32 1, %s3
  %s6 = scalar_select 0, %s5, %s3
  $region1: #{_pi_embedding_call.1} parent=0
    #allocation2 [shape = 'u8[4096]{0}', space=vmem, size = 0x1000, scoped, tag = 'input window, operand 1, single buffered']
    #allocation3 [shape = 's32[1]{0}', space=sflag, size = 0x4, scoped, tag = 'scoped memory for _pi_embedding_call.1']
    #allocation4 [shape = 's32[1]{0}', space=sflag, size = 0x4, scoped, tag = 'scoped memory for _pi_embedding_call.1']
    #allocation5 [shape = 'u8[4096]{0}', space=vmem, size = 0x1000, scoped, tag = 'output window, operand 0, single buffered']
    %7 = vsyncpa [#allocation3], 0
    %8 = vsyncpa [#allocation4], 0
    // Predicated region
    $region2: #{_pi_embedding_call.1} parent=1 // pred_check
      _
    $region3: #{_pi_embedding_call.1} parent=1 // pred_check_branch
      %10 = sbr.rel (0) target = $region5
    $region4: #{_pi_embedding_call.1} parent=1 // pred_region
      _
    $region5: #{_pi_embedding_call.1} parent=1 // pred_fallthru
      _
    // Predicated region
    $region6: #{_pi_embedding_call.1} parent=1 // pred_check
      _
    $region7: #{_pi_embedding_call.1} parent=1 // pred_check_branch
      %12 = sbr.rel (0) target = $region9
    $region8: #{_pi_embedding_call.1} parent=1 // pred_region
      %s14 = ssub.s32 128, 128
      %15 = vsyncadd [#allocation3], %s14
      %s17 = sshll.u32 [#allocation2], 4
      %s18 = int_to_ptr.vmem [resolvable:$true] %s17
      %20 = dma.hbm_to_vmem [thread:$0]  %s1, 128, %s18, [#allocation3]
    $region9: #{_pi_embedding_call.1} parent=1 // pred_fallthru
      _
    // Predicated region
    $region10: #{_pi_embedding_call.1} parent=1 // pred_check
      _
    $region11: #{_pi_embedding_call.1} parent=1 // pred_check_branch
      %22 = sbr.rel (0) target = $region13
    $region12: #{_pi_embedding_call.1} parent=1 // pred_region
      %23 = dma.done [#allocation3], 128
    $region13: #{_pi_embedding_call.1} parent=1 // pred_fallthru
      _
    %v24 = vlaneseq
    %v25 = vshrl.u32 %v24, 7
    %v26 = vadd.s32 %v25, 8
    %v27 = vadd.s32 %v25, 16
    %v28 = vadd.s32 %v25, 24
    %v29 = vadd.s32 %v25, 32
    %v30 = vadd.s32 %v25, 40
    %v31 = vadd.s32 %v25, 48
    %v32 = vadd.s32 %v25, 56
    %v33 = vadd.s32 %v25, 64
    %v34 = vadd.s32 %v25, 72
    %v35 = vadd.s32 %v25, 80
    %v36 = vadd.s32 %v25, 88
    %v37 = vadd.s32 %v25, 96
    %v38 = vadd.s32 %v25, 104
    %v39 = vadd.s32 %v25, 112
    %v40 = vadd.s32 %v25, 120
    %v41 = vld [vmem:[%s0] sm:$0x1]
    %v42 = vlaneseq
    %v43 = vshrl.u32 %v42, 7
    %v44 = vsub.s32 0, %v43
    %v45 = vrot.slane %v41, %v44
    %vm46 = vcmp.eq.s32.totalorder %v25, %v45
    %vm47 = vcmp.eq.s32.totalorder %v26, %v45
    %vm48 = vcmp.eq.s32.totalorder %v27, %v45
    %vm49 = vcmp.eq.s32.totalorder %v28, %v45
    %vm50 = vcmp.eq.s32.totalorder %v29, %v45
    %vm51 = vcmp.eq.s32.totalorder %v30, %v45
    %vm52 = vcmp.eq.s32.totalorder %v31, %v45
    %vm53 = vcmp.eq.s32.totalorder %v32, %v45
    %vm54 = vcmp.eq.s32.totalorder %v33, %v45
    %vm55 = vcmp.eq.s32.totalorder %v34, %v45
    %vm56 = vcmp.eq.s32.totalorder %v35, %v45
    %vm57 = vcmp.eq.s32.totalorder %v36, %v45
    %vm58 = vcmp.eq.s32.totalorder %v37, %v45
    %vm59 = vcmp.eq.s32.totalorder %v38, %v45
    %vm60 = vcmp.eq.s32.totalorder %v39, %v45
    %vm61 = vcmp.eq.s32.totalorder %v40, %v45
    %v62 = vsel %vm46, 1.0, 0.0
    %v63 = vsel %vm47, 1.0, 0.0
    %v64 = vsel %vm48, 1.0, 0.0
    %v65 = vsel %vm49, 1.0, 0.0
    %v66 = vsel %vm50, 1.0, 0.0
    %v67 = vsel %vm51, 1.0, 0.0
    %v68 = vsel %vm52, 1.0, 0.0
    %v69 = vsel %vm53, 1.0, 0.0
    %v70 = vsel %vm54, 1.0, 0.0
    %v71 = vsel %vm55, 1.0, 0.0
    %v72 = vsel %vm56, 1.0, 0.0
    %v73 = vsel %vm57, 1.0, 0.0
    %v74 = vsel %vm58, 1.0, 0.0
    %v75 = vsel %vm59, 1.0, 0.0
    %v76 = vsel %vm60, 1.0, 0.0
    %v77 = vsel %vm61, 1.0, 0.0
    %v78 = vld [vmem:[#allocation2] sm:$0xff]
    %79 = vmatprep.subr.mxu0 0.0
    %80 = vmatpush1.msra.mxu0 %v62
    %81 = vmatprep.subr.mxu0 0.0
    %82 = vmatpush1.msra.mxu0 %v63
    %83 = vmatprep.subr.mxu0 0.0
    %84 = vmatpush1.msra.mxu0 %v64
    %85 = vmatprep.subr.mxu0 0.0
    %86 = vmatpush1.msra.mxu0 %v65
    %87 = vmatprep.subr.mxu0 0.0
    %88 = vmatpush1.msra.mxu0 %v66
    %89 = vmatprep.subr.mxu0 0.0
    %90 = vmatpush1.msra.mxu0 %v67
    %91 = vmatprep.subr.mxu0 0.0
    %92 = vmatpush1.msra.mxu0 %v68
    %93 = vmatprep.subr.mxu0 0.0
    %94 = vmatpush1.msra.mxu0 %v69
    %95 = vmatprep.subr.mxu0 0.0
    %96 = vmatpush1.msra.mxu0 %v70
    %97 = vmatprep.subr.mxu0 0.0
    %98 = vmatpush1.msra.mxu0 %v71
    %99 = vmatprep.subr.mxu0 0.0
    %100 = vmatpush1.msra.mxu0 %v72
    %101 = vmatprep.subr.mxu0 0.0
    %102 = vmatpush1.msra.mxu0 %v73
    %103 = vmatprep.subr.mxu0 0.0
    %104 = vmatpush1.msra.mxu0 %v74
    %105 = vmatprep.subr.mxu0 0.0
    %106 = vmatpush1.msra.mxu0 %v75
    %107 = vmatprep.subr.mxu0 0.0
    %108 = vmatpush1.msra.mxu0 %v76
    %109 = vmatprep.subr.mxu0 0.0
    %110 = vmatpush1.msra.mxu0 %v77
    %111 = vmatprep.subr.mxu0 0.0
    %112 = vmatpush1.msra.mxu0 0.0
    %113 = vmatprep.subr.mxu0 0.0
    %114 = vmatpush1.msra.mxu0 0.0
    %115 = vmatprep.subr.mxu0 0.0
    %116 = vmatpush1.msra.mxu0 0.0
    %117 = vmatprep.subr.mxu0 0.0
    %118 = vmatpush1.msra.mxu0 0.0
    %119 = vmatprep.subr.mxu0 0.0
    %120 = vmatpush1.msra.mxu0 0.0
    %121 = vmatprep.subr.mxu0 0.0
    %122 = vmatpush1.msra.mxu0 0.0
    %123 = vmatprep.subr.mxu0 0.0
    %124 = vmatpush1.msra.mxu0 0.0
    %125 = vmatprep.subr.mxu0 0.0
    %126 = vmatpush1.msra.mxu0 0.0
    %127 = vmatprep.subr.mxu0 0.0
    %128 = vmatpush1.msra.mxu0 0.0
    %129 = vmatprep.subr.mxu0 0.0
    %130 = vmatpush1.msra.mxu0 0.0
    %131 = vmatprep.subr.mxu0 0.0
    %132 = vmatpush1.msra.mxu0 0.0
    %133 = vmatprep.subr.mxu0 0.0
    %134 = vmatpush1.msra.mxu0 0.0
    %135 = vmatprep.subr.mxu0 0.0
    %136 = vmatpush1.msra.mxu0 0.0
    %137 = vmatprep.subr.mxu0 0.0
    %138 = vmatpush1.msra.mxu0 0.0
    %139 = vmatprep.subr.mxu0 0.0
    %140 = vmatpush1.msra.mxu0 0.0
    %141 = vmatprep.subr.mxu0 0.0
    %142 = vmatpush1.msra.mxu0 0.0
    %143 = vmatprep.mubr.f32.mxu0 0.0
    %v144 = vand.u32 %v78, 4294901760
    %v145 = vsub.f32 %v78, %v144
    %v146 = vand.u32 %v145, 4294901760
    %v147 = vsub.f32 %v145, %v146
    %v148 = vand.u32 %v147, 4294901760
    %149 = vmatmul.mubr.f32.gmra.mrb[0].mxu0 %v148
    %v150 = vpop.f32.mrb[0].mxu0
    %v151 = vadd.f32 0.0, %v150
    %v152 = vpop.f32.mrb[0].mxu0
    %153 = vdwg.mxu0
    %154 = vmatprep.subr.mxu0 0.0
    %v155 = vsub.f32 %v62, %v62
    %v156 = vand.u32 %v155, 4294901760
    %v157 = vsub.f32 %v155, %v156
    %v158 = vand.u32 %v157, 4294901760
    %159 = vmatpush1.msra.mxu0 %v158
    %160 = vmatprep.subr.mxu0 0.0
    %v161 = vsub.f32 %v63, %v63
    %v162 = vand.u32 %v161, 4294901760
    %v163 = vsub.f32 %v161, %v162
    %v164 = vand.u32 %v163, 4294901760
    %165 = vmatpush1.msra.mxu0 %v164
    %166 = vmatprep.subr.mxu0 0.0
    %v167 = vsub.f32 %v64, %v64
    %v168 = vand.u32 %v167, 4294901760
    %v169 = vsub.f32 %v167, %v168
    %v170 = vand.u32 %v169, 4294901760
    %171 = vmatpush1.msra.mxu0 %v170
    %172 = vmatprep.subr.mxu0 0.0
    %v173 = vsub.f32 %v65, %v65
    %v174 = vand.u32 %v173, 4294901760
    %v175 = vsub.f32 %v173, %v174
    %v176 = vand.u32 %v175, 4294901760
    %177 = vmatpush1.msra.mxu0 %v176
    %178 = vmatprep.subr.mxu0 0.0
    %v179 = vsub.f32 %v66, %v66
    %v180 = vand.u32 %v179, 4294901760
    %v181 = vsub.f32 %v179, %v180
    %v182 = vand.u32 %v181, 4294901760
    %183 = vmatpush1.msra.mxu0 %v182
    %184 = vmatprep.subr.mxu0 0.0
    %v185 = vsub.f32 %v67, %v67
    %v186 = vand.u32 %v185, 4294901760
    %v187 = vsub.f32 %v185, %v186
    %v188 = vand.u32 %v187, 4294901760
    %189 = vmatpush1.msra.mxu0 %v188
    %190 = vmatprep.subr.mxu0 0.0
    %v191 = vsub.f32 %v68, %v68
    %v192 = vand.u32 %v191, 4294901760
    %v193 = vsub.f32 %v191, %v192
    %v194 = vand.u32 %v193, 4294901760
    %195 = vmatpush1.msra.mxu0 %v194
    %196 = vmatprep.subr.mxu0 0.0
    %v197 = vsub.f32 %v69, %v69
    %v198 = vand.u32 %v197, 4294901760
    %v199 = vsub.f32 %v197, %v198
    %v200 = vand.u32 %v199, 4294901760
    %201 = vmatpush1.msra.mxu0 %v200
    %202 = vmatprep.subr.mxu0 0.0
    %v203 = vsub.f32 %v70, %v70
    %v204 = vand.u32 %v203, 4294901760
    %v205 = vsub.f32 %v203, %v204
    %v206 = vand.u32 %v205, 4294901760
    %207 = vmatpush1.msra.mxu0 %v206
    %208 = vmatprep.subr.mxu0 0.0
    %v209 = vsub.f32 %v71, %v71
    %v210 = vand.u32 %v209, 4294901760
    %v211 = vsub.f32 %v209, %v210
    %v212 = vand.u32 %v211, 4294901760
    %213 = vmatpush1.msra.mxu0 %v212
    %214 = vmatprep.subr.mxu0 0.0
    %v215 = vsub.f32 %v72, %v72
    %v216 = vand.u32 %v215, 4294901760
    %v217 = vsub.f32 %v215, %v216
    %v218 = vand.u32 %v217, 4294901760
    %219 = vmatpush1.msra.mxu0 %v218
    %220 = vmatprep.subr.mxu0 0.0
    %v221 = vsub.f32 %v73, %v73
    %v222 = vand.u32 %v221, 4294901760
    %v223 = vsub.f32 %v221, %v222
    %v224 = vand.u32 %v223, 4294901760
    %225 = vmatpush1.msra.mxu0 %v224
    %226 = vmatprep.subr.mxu0 0.0
    %v227 = vsub.f32 %v74, %v74
    %v228 = vand.u32 %v227, 4294901760
    %v229 = vsub.f32 %v227, %v228
    %v230 = vand.u32 %v229, 4294901760
    %231 = vmatpush1.msra.mxu0 %v230
    %232 = vmatprep.subr.mxu0 0.0
    %v233 = vsub.f32 %v75, %v75
    %v234 = vand.u32 %v233, 4294901760
    %v235 = vsub.f32 %v233, %v234
    %v236 = vand.u32 %v235, 4294901760
    %237 = vmatpush1.msra.mxu0 %v236
    %238 = vmatprep.subr.mxu0 0.0
    %v239 = vsub.f32 %v76, %v76
    %v240 = vand.u32 %v239, 4294901760
    %v241 = vsub.f32 %v239, %v240
    %v242 = vand.u32 %v241, 4294901760
    %243 = vmatpush1.msra.mxu0 %v242
    %244 = vmatprep.subr.mxu0 0.0
    %v245 = vsub.f32 %v77, %v77
    %v246 = vand.u32 %v245, 4294901760
    %v247 = vsub.f32 %v245, %v246
    %v248 = vand.u32 %v247, 4294901760
    %249 = vmatpush1.msra.mxu0 %v248
    %250 = vmatprep.subr.mxu0 0.0
    %251 = vmatpush1.msra.mxu0 0.0
    %252 = vmatprep.subr.mxu0 0.0
    %253 = vmatpush1.msra.mxu0 0.0
    %254 = vmatprep.subr.mxu0 0.0
    %255 = vmatpush1.msra.mxu0 0.0
    %256 = vmatprep.subr.mxu0 0.0
    %257 = vmatpush1.msra.mxu0 0.0
    %258 = vmatprep.subr.mxu0 0.0
    %259 = vmatpush1.msra.mxu0 0.0
    %260 = vmatprep.subr.mxu0 0.0
    %261 = vmatpush1.msra.mxu0 0.0
    %262 = vmatprep.subr.mxu0 0.0
    %263 = vmatpush1.msra.mxu0 0.0
    %264 = vmatprep.subr.mxu0 0.0
    %265 = vmatpush1.msra.mxu0 0.0
    %266 = vmatprep.subr.mxu0 0.0
    %267 = vmatpush1.msra.mxu0 0.0
    %268 = vmatprep.subr.mxu0 0.0
    %269 = vmatpush1.msra.mxu0 0.0
    %270 = vmatprep.subr.mxu0 0.0
    %271 = vmatpush1.msra.mxu0 0.0
    %272 = vmatprep.subr.mxu0 0.0
    %273 = vmatpush1.msra.mxu0 0.0
    %274 = vmatprep.subr.mxu0 0.0
    %275 = vmatpush1.msra.mxu0 0.0
    %276 = vmatprep.subr.mxu0 0.0
    %277 = vmatpush1.msra.mxu0 0.0
    %278 = vmatprep.subr.mxu0 0.0
    %279 = vmatpush1.msra.mxu0 0.0
    %280 = vmatprep.subr.mxu0 0.0
    %281 = vmatpush1.msra.mxu0 0.0
    %282 = vmatprep.mubr.f32.mxu0 0.0
    %v283 = vand.u32 %v78, 4294901760
    %284 = vmatmul.mubr.f32.gmra.mrb[0].mxu0 %v283
    %v285 = vpop.f32.mrb[0].mxu0
    %v286 = vadd.f32 %v151, %v285
    %v287 = vpop.f32.mrb[0].mxu0
    %288 = vdwg.mxu0
    %289 = vmatprep.subr.mxu0 0.0
    %v290 = vsub.f32 %v62, %v62
    %291 = vmatpush1.msra.mxu0 %v290
    %292 = vmatprep.subr.mxu0 0.0
    %v293 = vsub.f32 %v63, %v63
    %294 = vmatpush1.msra.mxu0 %v293
    %295 = vmatprep.subr.mxu0 0.0
    %v296 = vsub.f32 %v64, %v64
    %297 = vmatpush1.msra.mxu0 %v296
    %298 = vmatprep.subr.mxu0 0.0
    %v299 = vsub.f32 %v65, %v65
    %300 = vmatpush1.msra.mxu0 %v299
    %301 = vmatprep.subr.mxu0 0.0
    %v302 = vsub.f32 %v66, %v66
    %303 = vmatpush1.msra.mxu0 %v302
    %304 = vmatprep.subr.mxu0 0.0
    %v305 = vsub.f32 %v67, %v67
    %306 = vmatpush1.msra.mxu0 %v305
    %307 = vmatprep.subr.mxu0 0.0
    %v308 = vsub.f32 %v68, %v68
    %309 = vmatpush1.msra.mxu0 %v308
    %310 = vmatprep.subr.mxu0 0.0
    %v311 = vsub.f32 %v69, %v69
    %312 = vmatpush1.msra.mxu0 %v311
    %313 = vmatprep.subr.mxu0 0.0
    %v314 = vsub.f32 %v70, %v70
    %315 = vmatpush1.msra.mxu0 %v314
    %316 = vmatprep.subr.mxu0 0.0
    %v317 = vsub.f32 %v71, %v71
    %318 = vmatpush1.msra.mxu0 %v317
    %319 = vmatprep.subr.mxu0 0.0
    %v320 = vsub.f32 %v72, %v72
    %321 = vmatpush1.msra.mxu0 %v320
    %322 = vmatprep.subr.mxu0 0.0
    %v323 = vsub.f32 %v73, %v73
    %324 = vmatpush1.msra.mxu0 %v323
    %325 = vmatprep.subr.mxu0 0.0
    %v326 = vsub.f32 %v74, %v74
    %327 = vmatpush1.msra.mxu0 %v326
    %328 = vmatprep.subr.mxu0 0.0
    %v329 = vsub.f32 %v75, %v75
    %330 = vmatpush1.msra.mxu0 %v329
    %331 = vmatprep.subr.mxu0 0.0
    %v332 = vsub.f32 %v76, %v76
    %333 = vmatpush1.msra.mxu0 %v332
    %334 = vmatprep.subr.mxu0 0.0
    %v335 = vsub.f32 %v77, %v77
    %336 = vmatpush1.msra.mxu0 %v335
    %337 = vmatprep.subr.mxu0 0.0
    %338 = vmatpush1.msra.mxu0 0.0
    %339 = vmatprep.subr.mxu0 0.0
    %340 = vmatpush1.msra.mxu0 0.0
    %341 = vmatprep.subr.mxu0 0.0
    %342 = vmatpush1.msra.mxu0 0.0
    %343 = vmatprep.subr.mxu0 0.0
    %344 = vmatpush1.msra.mxu0 0.0
    %345 = vmatprep.subr.mxu0 0.0
    %346 = vmatpush1.msra.mxu0 0.0
    %347 = vmatprep.subr.mxu0 0.0
    %348 = vmatpush1.msra.mxu0 0.0
    %349 = vmatprep.subr.mxu0 0.0
    %350 = vmatpush1.msra.mxu0 0.0
    %351 = vmatprep.subr.mxu0 0.0
    %352 = vmatpush1.msra.mxu0 0.0
    %353 = vmatprep.subr.mxu0 0.0
    %354 = vmatpush1.msra.mxu0 0.0
    %355 = vmatprep.subr.mxu0 0.0
    %356 = vmatpush1.msra.mxu0 0.0
    %357 = vmatprep.subr.mxu0 0.0
    %358 = vmatpush1.msra.mxu0 0.0
    %359 = vmatprep.subr.mxu0 0.0
    %360 = vmatpush1.msra.mxu0 0.0
    %361 = vmatprep.subr.mxu0 0.0
    %362 = vmatpush1.msra.mxu0 0.0
    %363 = vmatprep.subr.mxu0 0.0
    %364 = vmatpush1.msra.mxu0 0.0
    %365 = vmatprep.subr.mxu0 0.0
    %366 = vmatpush1.msra.mxu0 0.0
    %367 = vmatprep.subr.mxu0 0.0
    %368 = vmatpush1.msra.mxu0 0.0
    %369 = vmatprep.mubr.f32.mxu0 0.0
    %v370 = vand.u32 %v78, 4294901760
    %v371 = vsub.f32 %v78, %v370
    %372 = vmatmul.mubr.f32.gmra.mrb[0].mxu0 %v371
    %v373 = vpop.f32.mrb[0].mxu0
    %v374 = vadd.f32 %v286, %v373
    %v375 = vpop.f32.mrb[0].mxu0
    %376 = vdwg.mxu0
    %377 = vmatprep.subr.mxu0 0.0
    %378 = vmatpush1.msra.mxu0 %v62
    %379 = vmatprep.subr.mxu0 0.0
    %380 = vmatpush1.msra.mxu0 %v63
    %381 = vmatprep.subr.mxu0 0.0
    %382 = vmatpush1.msra.mxu0 %v64
    %383 = vmatprep.subr.mxu0 0.0
    %384 = vmatpush1.msra.mxu0 %v65
    %385 = vmatprep.subr.mxu0 0.0
    %386 = vmatpush1.msra.mxu0 %v66
    %387 = vmatprep.subr.mxu0 0.0
    %388 = vmatpush1.msra.mxu0 %v67
    %389 = vmatprep.subr.mxu0 0.0
    %390 = vmatpush1.msra.mxu0 %v68
    %391 = vmatprep.subr.mxu0 0.0
    %392 = vmatpush1.msra.mxu0 %v69
    %393 = vmatprep.subr.mxu0 0.0
    %394 = vmatpush1.msra.mxu0 %v70
    %395 = vmatprep.subr.mxu0 0.0
    %396 = vmatpush1.msra.mxu0 %v71
    %397 = vmatprep.subr.mxu0 0.0
    %398 = vmatpush1.msra.mxu0 %v72
    %399 = vmatprep.subr.mxu0 0.0
    %400 = vmatpush1.msra.mxu0 %v73
    %401 = vmatprep.subr.mxu0 0.0
    %402 = vmatpush1.msra.mxu0 %v74
    %403 = vmatprep.subr.mxu0 0.0
    %404 = vmatpush1.msra.mxu0 %v75
    %405 = vmatprep.subr.mxu0 0.0
    %406 = vmatpush1.msra.mxu0 %v76
    %407 = vmatprep.subr.mxu0 0.0
    %408 = vmatpush1.msra.mxu0 %v77
    %409 = vmatprep.subr.mxu0 0.0
    %410 = vmatpush1.msra.mxu0 0.0
    %411 = vmatprep.subr.mxu0 0.0
    %412 = vmatpush1.msra.mxu0 0.0
    %413 = vmatprep.subr.mxu0 0.0
    %414 = vmatpush1.msra.mxu0 0.0
    %415 = vmatprep.subr.mxu0 0.0
    %416 = vmatpush1.msra.mxu0 0.0
    %417 = vmatprep.subr.mxu0 0.0
    %418 = vmatpush1.msra.mxu0 0.0
    %419 = vmatprep.subr.mxu0 0.0
    %420 = vmatpush1.msra.mxu0 0.0
    %421 = vmatprep.subr.mxu0 0.0
    %422 = vmatpush1.msra.mxu0 0.0
    %423 = vmatprep.subr.mxu0 0.0
    %424 = vmatpush1.msra.mxu0 0.0
    %425 = vmatprep.subr.mxu0 0.0
    %426 = vmatpush1.msra.mxu0 0.0
    %427 = vmatprep.subr.mxu0 0.0
    %428 = vmatpush1.msra.mxu0 0.0
    %429 = vmatprep.subr.mxu0 0.0
    %430 = vmatpush1.msra.mxu0 0.0
    %431 = vmatprep.subr.mxu0 0.0
    %432 = vmatpush1.msra.mxu0 0.0
    %433 = vmatprep.subr.mxu0 0.0
    %434 = vmatpush1.msra.mxu0 0.0
    %435 = vmatprep.subr.mxu0 0.0
    %436 = vmatpush1.msra.mxu0 0.0
    %437 = vmatprep.subr.mxu0 0.0
    %438 = vmatpush1.msra.mxu0 0.0
    %439 = vmatprep.subr.mxu0 0.0
    %440 = vmatpush1.msra.mxu0 0.0
    %441 = vmatprep.mubr.f32.mxu0 0.0
    %v442 = vand.u32 %v78, 4294901760
    %v443 = vsub.f32 %v78, %v442
    %v444 = vand.u32 %v443, 4294901760
    %445 = vmatmul.mubr.f32.gmra.mrb[0].mxu0 %v444
    %v446 = vpop.f32.mrb[0].mxu0
    %v447 = vadd.f32 %v374, %v446
    %v448 = vpop.f32.mrb[0].mxu0
    %449 = vdwg.mxu0
    %450 = vmatprep.subr.mxu0 0.0
    %v451 = vsub.f32 %v62, %v62
    %v452 = vand.u32 %v451, 4294901760
    %453 = vmatpush1.msra.mxu0 %v452
    %454 = vmatprep.subr.mxu0 0.0
    %v455 = vsub.f32 %v63, %v63
    %v456 = vand.u32 %v455, 4294901760
    %457 = vmatpush1.msra.mxu0 %v456
    %458 = vmatprep.subr.mxu0 0.0
    %v459 = vsub.f32 %v64, %v64
    %v460 = vand.u32 %v459, 4294901760
    %461 = vmatpush1.msra.mxu0 %v460
    %462 = vmatprep.subr.mxu0 0.0
    %v463 = vsub.f32 %v65, %v65
    %v464 = vand.u32 %v463, 4294901760
    %465 = vmatpush1.msra.mxu0 %v464
    %466 = vmatprep.subr.mxu0 0.0
    %v467 = vsub.f32 %v66, %v66
    %v468 = vand.u32 %v467, 4294901760
    %469 = vmatpush1.msra.mxu0 %v468
    %470 = vmatprep.subr.mxu0 0.0
    %v471 = vsub.f32 %v67, %v67
    %v472 = vand.u32 %v471, 4294901760
    %473 = vmatpush1.msra.mxu0 %v472
    %474 = vmatprep.subr.mxu0 0.0
    %v475 = vsub.f32 %v68, %v68
    %v476 = vand.u32 %v475, 4294901760
    %477 = vmatpush1.msra.mxu0 %v476
    %478 = vmatprep.subr.mxu0 0.0
    %v479 = vsub.f32 %v69, %v69
    %v480 = vand.u32 %v479, 4294901760
    %481 = vmatpush1.msra.mxu0 %v480
    %482 = vmatprep.subr.mxu0 0.0
    %v483 = vsub.f32 %v70, %v70
    %v484 = vand.u32 %v483, 4294901760
    %485 = vmatpush1.msra.mxu0 %v484
    %486 = vmatprep.subr.mxu0 0.0
    %v487 = vsub.f32 %v71, %v71
    %v488 = vand.u32 %v487, 4294901760
    %489 = vmatpush1.msra.mxu0 %v488
    %490 = vmatprep.subr.mxu0 0.0
    %v491 = vsub.f32 %v72, %v72
    %v492 = vand.u32 %v491, 4294901760
    %493 = vmatpush1.msra.mxu0 %v492
    %494 = vmatprep.subr.mxu0 0.0
    %v495 = vsub.f32 %v73, %v73
    %v496 = vand.u32 %v495, 4294901760
    %497 = vmatpush1.msra.mxu0 %v496
    %498 = vmatprep.subr.mxu0 0.0
    %v499 = vsub.f32 %v74, %v74
    %v500 = vand.u32 %v499, 4294901760
    %501 = vmatpush1.msra.mxu0 %v500
    %502 = vmatprep.subr.mxu0 0.0
    %v503 = vsub.f32 %v75, %v75
    %v504 = vand.u32 %v503, 4294901760
    %505 = vmatpush1.msra.mxu0 %v504
    %506 = vmatprep.subr.mxu0 0.0
    %v507 = vsub.f32 %v76, %v76
    %v508 = vand.u32 %v507, 4294901760
    %509 = vmatpush1.msra.mxu0 %v508
    %510 = vmatprep.subr.mxu0 0.0
    %v511 = vsub.f32 %v77, %v77
    %v512 = vand.u32 %v511, 4294901760
    %513 = vmatpush1.msra.mxu0 %v512
    %514 = vmatprep.subr.mxu0 0.0
    %515 = vmatpush1.msra.mxu0 0.0
    %516 = vmatprep.subr.mxu0 0.0
    %517 = vmatpush1.msra.mxu0 0.0
    %518 = vmatprep.subr.mxu0 0.0
    %519 = vmatpush1.msra.mxu0 0.0
    %520 = vmatprep.subr.mxu0 0.0
    %521 = vmatpush1.msra.mxu0 0.0
    %522 = vmatprep.subr.mxu0 0.0
    %523 = vmatpush1.msra.mxu0 0.0
    %524 = vmatprep.subr.mxu0 0.0
    %525 = vmatpush1.msra.mxu0 0.0
    %526 = vmatprep.subr.mxu0 0.0
    %527 = vmatpush1.msra.mxu0 0.0
    %528 = vmatprep.subr.mxu0 0.0
    %529 = vmatpush1.msra.mxu0 0.0
    %530 = vmatprep.subr.mxu0 0.0
    %531 = vmatpush1.msra.mxu0 0.0
    %532 = vmatprep.subr.mxu0 0.0
    %533 = vmatpush1.msra.mxu0 0.0
    %534 = vmatprep.subr.mxu0 0.0
    %535 = vmatpush1.msra.mxu0 0.0
    %536 = vmatprep.subr.mxu0 0.0
    %537 = vmatpush1.msra.mxu0 0.0
    %538 = vmatprep.subr.mxu0 0.0
    %539 = vmatpush1.msra.mxu0 0.0
    %540 = vmatprep.subr.mxu0 0.0
    %541 = vmatpush1.msra.mxu0 0.0
    %542 = vmatprep.subr.mxu0 0.0
    %543 = vmatpush1.msra.mxu0 0.0
    %544 = vmatprep.subr.mxu0 0.0
    %545 = vmatpush1.msra.mxu0 0.0
    %546 = vmatprep.mubr.f32.mxu0 0.0
    %v547 = vand.u32 %v78, 4294901760
    %548 = vmatmul.mubr.f32.gmra.mrb[0].mxu0 %v547
    %v549 = vpop.f32.mrb[0].mxu0
    %v550 = vadd.f32 %v447, %v549
    %v551 = vpop.f32.mrb[0].mxu0
    %552 = vdwg.mxu0
    %553 = vmatprep.subr.mxu0 0.0
    %554 = vmatpush1.msra.mxu0 %v62
    %555 = vmatprep.subr.mxu0 0.0
    %556 = vmatpush1.msra.mxu0 %v63
    %557 = vmatprep.subr.mxu0 0.0
    %558 = vmatpush1.msra.mxu0 %v64
    %559 = vmatprep.subr.mxu0 0.0
    %560 = vmatpush1.msra.mxu0 %v65
    %561 = vmatprep.subr.mxu0 0.0
    %562 = vmatpush1.msra.mxu0 %v66
    %563 = vmatprep.subr.mxu0 0.0
    %564 = vmatpush1.msra.mxu0 %v67
    %565 = vmatprep.subr.mxu0 0.0
    %566 = vmatpush1.msra.mxu0 %v68
    %567 = vmatprep.subr.mxu0 0.0
    %568 = vmatpush1.msra.mxu0 %v69
    %569 = vmatprep.subr.mxu0 0.0
    %570 = vmatpush1.msra.mxu0 %v70
    %571 = vmatprep.subr.mxu0 0.0
    %572 = vmatpush1.msra.mxu0 %v71
    %573 = vmatprep.subr.mxu0 0.0
    %574 = vmatpush1.msra.mxu0 %v72
    %575 = vmatprep.subr.mxu0 0.0
    %576 = vmatpush1.msra.mxu0 %v73
    %577 = vmatprep.subr.mxu0 0.0
    %578 = vmatpush1.msra.mxu0 %v74
    %579 = vmatprep.subr.mxu0 0.0
    %580 = vmatpush1.msra.mxu0 %v75
    %581 = vmatprep.subr.mxu0 0.0
    %582 = vmatpush1.msra.mxu0 %v76
    %583 = vmatprep.subr.mxu0 0.0
    %584 = vmatpush1.msra.mxu0 %v77
    %585 = vmatprep.subr.mxu0 0.0
    %586 = vmatpush1.msra.mxu0 0.0
    %587 = vmatprep.subr.mxu0 0.0
    %588 = vmatpush1.msra.mxu0 0.0
    %589 = vmatprep.subr.mxu0 0.0
    %590 = vmatpush1.msra.mxu0 0.0
    %591 = vmatprep.subr.mxu0 0.0
    %592 = vmatpush1.msra.mxu0 0.0
    %593 = vmatprep.subr.mxu0 0.0
    %594 = vmatpush1.msra.mxu0 0.0
    %595 = vmatprep.subr.mxu0 0.0
    %596 = vmatpush1.msra.mxu0 0.0
    %597 = vmatprep.subr.mxu0 0.0
    %598 = vmatpush1.msra.mxu0 0.0
    %599 = vmatprep.subr.mxu0 0.0
    %600 = vmatpush1.msra.mxu0 0.0
    %601 = vmatprep.subr.mxu0 0.0
    %602 = vmatpush1.msra.mxu0 0.0
    %603 = vmatprep.subr.mxu0 0.0
    %604 = vmatpush1.msra.mxu0 0.0
    %605 = vmatprep.subr.mxu0 0.0
    %606 = vmatpush1.msra.mxu0 0.0
    %607 = vmatprep.subr.mxu0 0.0
    %608 = vmatpush1.msra.mxu0 0.0
    %609 = vmatprep.subr.mxu0 0.0
    %610 = vmatpush1.msra.mxu0 0.0
    %611 = vmatprep.subr.mxu0 0.0
    %612 = vmatpush1.msra.mxu0 0.0
    %613 = vmatprep.subr.mxu0 0.0
    %614 = vmatpush1.msra.mxu0 0.0
    %615 = vmatprep.subr.mxu0 0.0
    %616 = vmatpush1.msra.mxu0 0.0
    %617 = vmatprep.mubr.f32.mxu0 0.0
    %v618 = vand.u32 %v78, 4294901760
    %619 = vmatmul.mubr.f32.gmra.mrb[0].mxu0 %v618
    %v620 = vpop.f32.mrb[0].mxu0
    %v621 = vadd.f32 %v550, %v620
    %v622 = vpop.f32.mrb[0].mxu0
    %623 = vdwg.mxu0
    %v624 = vmax.f32 %v621, -3.5
    %v625 = vmin.f32 %v624, 3.5
    %v626 = vtanh.pop %v625
    %v627 = vadd.f32 %v626, 1.0
    %v628 = vmul.f32 %v627, 0.5
    %629 = vst [vmem:[#allocation5] sm:$0xff] %v628
    // Predicated region
    $region14: #{_pi_embedding_call.1} parent=1 // pred_check
      _
    $region15: #{_pi_embedding_call.1} parent=1 // pred_check_branch
      %631 = sbr.rel (0) target = $region17
    $region16: #{_pi_embedding_call.1} parent=1 // pred_region
      %s633 = ssub.s32 128, 128
      %634 = vsyncadd [#allocation4], %s633
      %s636 = sshll.u32 [#allocation5], 4
      %s637 = int_to_ptr.vmem [resolvable:$true] %s636
      %639 = dma.vmem_to_hbm [thread:$0]  %s637, 128, %s2, [#allocation4]
    $region17: #{_pi_embedding_call.1} parent=1 // pred_fallthru
      _
    // Predicated region
    $region18: #{_pi_embedding_call.1} parent=1 // pred_check
      _
    $region19: #{_pi_embedding_call.1} parent=1 // pred_check_branch
      %641 = sbr.rel (0) target = $region21
    $region20: #{_pi_embedding_call.1} parent=1 // pred_region
      %642 = dma.done [#allocation4], 128
    $region21: #{_pi_embedding_call.1} parent=1 // pred_fallthru
      _
    %643 = vsyncpa [#allocation3], 1
    %644 = vsyncpa [#allocation4], 1

</llo_original>
